<compile_context>
chip_gen: v7x
topology: tpu7x:2x2x1
jax: 0.10.0
libtpu: 0.0.40
codegen_flags: <defaults>
</compile_context>

<pallas_src>
import jax
import jax.numpy as jnp
from jax.experimental import pallas as pl
from jax.experimental.pallas import tpu as pltpu


def _round_up(n, m):
    return ((n + m - 1) // m) * m


def _dqn_mlp_kernel(x_ref, w1_ref, b1_ref, w2_ref, b2_ref, w3_ref, b3_ref, o_ref):
    # In-kernel cast of the activations to the matmul dtype (bf16): free VALU op,
    # avoids a separate wrapper-side cast pass over x in HBM.
    x = x_ref[...].astype(w1_ref.dtype)

    # Layer 1: Linear(state_dim -> 512) + ReLU  (bf16 MXU operands, f32 accumulate)
    h1 = jnp.dot(x, w1_ref[...], preferred_element_type=jnp.float32)
    h1 = jnp.maximum(h1 + b1_ref[...], 0.0)          # f32 epilogue (v5e VPU has no bf16)
    h1 = h1.astype(w2_ref.dtype)                     # bf16 back into the MXU

    # Layer 2: Linear(512 -> 256) + ReLU
    h2 = jnp.dot(h1, w2_ref[...], preferred_element_type=jnp.float32)
    h2 = jnp.maximum(h2 + b2_ref[...], 0.0)          # keep h2 in f32 into layer 3

    # Layer 3: Linear(256 -> action_dim) in f32 (tiny FLOPs, better Q-value precision).
    out = jnp.dot(h2, w3_ref[...], preferred_element_type=jnp.float32)
    o_ref[...] = (out + b3_ref[...]).astype(o_ref.dtype)


def prepare_params(params, compute_dtype=jnp.bfloat16):
    """One-time prep (call once, reuse every step): bf16 copies of the big weights,
    f32 last layer + biases, all biases shaped (1, out) for TPU lane layout."""
    def bias2d(b):
        return b.reshape(1, -1).astype(jnp.float32)
    return {
        "w1": params["w1"].astype(compute_dtype),
        "w2": params["w2"].astype(compute_dtype),
        "w3": params["w3"].astype(jnp.float32),
        "b1": bias2d(params["b1"]),
        "b2": bias2d(params["b2"]),
        "b3": bias2d(params["b3"]),
    }


def _choose_tile(B, block_b, min_steps=2):
    """Pick a batch tile that (a) caps VMEM via block_b, (b) minimizes batch padding,
    (c) is a multiple of 16 (bf16 sublane packing), and (d) yields >=2 grid steps when
    B is big enough so both v7x TensorCores get work under dimension_semantics=parallel."""
    steps = max(pl.cdiv(B, block_b), min(min_steps, pl.cdiv(B, 16)))
    tb = _round_up(pl.cdiv(B, steps), 16)
    b_pad = _round_up(B, tb)
    return tb, b_pad


def dqn_forward(x, prepared, *, block_b=2048):
    """x: (B, state_dim) float32. prepared: output of prepare_params() (cached)."""
    w1, b1 = prepared["w1"], prepared["b1"]
    w2, b2 = prepared["w2"], prepared["b2"]
    w3, b3 = prepared["w3"], prepared["b3"]

    B, state_dim = x.shape
    H1, H2 = w1.shape[1], w2.shape[1]
    action_dim = w3.shape[1]

    tb, b_pad = _choose_tile(B, block_b)
    if b_pad != B:
        x = jnp.pad(x, ((0, b_pad - B), (0, 0)))

    grid = (b_pad // tb,)

    weight_bytes = sum(a.size * a.dtype.itemsize for a in (w1, b1, w2, b2, w3, b3))
    cost = pl.CostEstimate(
        flops=2 * b_pad * (state_dim * H1 + H1 * H2 + H2 * action_dim),
        transcendentals=0,
        bytes_accessed=int(x.size * x.dtype.itemsize
                           + weight_bytes
                           + b_pad * action_dim * 4),
    )

    out = pl.pallas_call(
        _dqn_mlp_kernel,
        out_shape=jax.ShapeDtypeStruct((b_pad, action_dim), jnp.float32),
        grid=grid,
        in_specs=[
            # batch-tiled activations (f32; cast to bf16 inside the kernel)
            pl.BlockSpec((tb, state_dim), lambda i: (i, 0)),
            # weights/biases: whole array, constant index map -> fetched once, VMEM-resident
            pl.BlockSpec(w1.shape, lambda i: (0, 0)),
            pl.BlockSpec(b1.shape, lambda i: (0, 0)),
            pl.BlockSpec(w2.shape, lambda i: (0, 0)),
            pl.BlockSpec(b2.shape, lambda i: (0, 0)),
            pl.BlockSpec(w3.shape, lambda i: (0, 0)),
            pl.BlockSpec(b3.shape, lambda i: (0, 0)),
        ],
        # Output block covers the full (small) action_dim -> contiguous HBM writes,
        # no 8->128 lane padding and no post-kernel slice over a padded slab.
        out_specs=pl.BlockSpec((tb, action_dim), lambda i: (i, 0)),
        compiler_params=pltpu.CompilerParams(
            dimension_semantics=("parallel",),   # megacore-shard the batch axis (v7x)
        ),
        cost_estimate=cost,
    )(x, w1, b1, w2, b2, w3, b3)

    # Strip only the (small) batch padding.
    return out if b_pad == B else out[:B]


def init_params(key, state_dim, action_dim):
    """Deterministic synthetic init (mimics nn.Linear uniform(-1/sqrt(fan_in), +1/sqrt(fan_in)))."""
    dims = [(state_dim, 512), (512, 256), (256, action_dim)]
    params = {}
    for i, (fan_in, fan_out) in enumerate(dims, start=1):
        key, kw, kb = jax.random.split(key, 3)
        bound = 1.0 / jnp.sqrt(jnp.float32(fan_in))
        params[f"w{i}"] = jax.random.uniform(
            kw, (fan_in, fan_out), jnp.float32, -bound, bound)
        params[f"b{i}"] = jax.random.uniform(
            kb, (1, fan_out), jnp.float32, -bound, bound)
    return params


def reference_forward(x, params):
    h1 = jnp.maximum(x @ params["w1"] + params["b1"], 0.0)
    h2 = jnp.maximum(h1 @ params["w2"] + params["b2"], 0.0)
    return h2 @ params["w3"] + params["b3"]


if __name__ == "__main__":
    state_dim, action_dim, batch = 16, 8, 8

    key = jax.random.PRNGKey(0)
    key, kx = jax.random.split(key)
    x = jax.random.normal(kx, (batch, state_dim), jnp.float32)
    params = init_params(key, state_dim, action_dim)

    # One-time param prep (cached across env steps in a real DQN loop).
    prepared = prepare_params(params)
    fwd = jax.jit(dqn_forward)

    out = fwd(x, prepared)
    out = jax.block_until_ready(out)

    ref = reference_forward(x, params)  # f32 reference; kernel uses bf16 for layers 1-2
    assert out.shape == (batch, action_dim)
    assert jnp.allclose(out, ref, atol=5e-2, rtol=5e-2)

    print("KERNEL_OK")
</pallas_src>

<mosaic_0001>
module attributes {stable_mosaic.version = 11 : i64} {
  func.func @_dqn_mlp_kernel(%arg0: i32, %arg1: memref<16x16xf32, #tpu.memory_space<vmem>>, %arg2: memref<16x512xbf16, #tpu.memory_space<vmem>>, %arg3: memref<1x512xf32, #tpu.memory_space<vmem>>, %arg4: memref<512x256xbf16, #tpu.memory_space<vmem>>, %arg5: memref<1x256xf32, #tpu.memory_space<vmem>>, %arg6: memref<256x8xf32, #tpu.memory_space<vmem>>, %arg7: memref<1x8xf32, #tpu.memory_space<vmem>>, %arg8: memref<16x8xf32, #tpu.memory_space<vmem>>) attributes {dimension_semantics = [#tpu.dimension_semantics<parallel>], iteration_bounds = array<i64: 1>, scalar_prefetch = 0 : i64, scratch_operands = 0 : i64, tpu.core_type = #tpu.core_type<tc>, window_params = [{transform_indices = @transform_0, window_bounds = array<i64: 16, 16>}, {pipeline_mode = #tpu.pipeline_mode<synchronous>, transform_indices = @transform_1, window_bounds = array<i64: 16, 512>}, {pipeline_mode = #tpu.pipeline_mode<synchronous>, transform_indices = @transform_2, window_bounds = array<i64: 1, 512>}, {pipeline_mode = #tpu.pipeline_mode<synchronous>, transform_indices = @transform_3, window_bounds = array<i64: 512, 256>}, {pipeline_mode = #tpu.pipeline_mode<synchronous>, transform_indices = @transform_4, window_bounds = array<i64: 1, 256>}, {pipeline_mode = #tpu.pipeline_mode<synchronous>, transform_indices = @transform_5, window_bounds = array<i64: 256, 8>}, {pipeline_mode = #tpu.pipeline_mode<synchronous>, transform_indices = @transform_6, window_bounds = array<i64: 1, 8>}, {transform_indices = @transform_7, window_bounds = array<i64: 16, 8>}]} {
    %c0 = arith.constant 0 : index
    %c0_0 = arith.constant 0 : index
    %0 = vector.load %arg1[%c0, %c0_0] : memref<16x16xf32, #tpu.memory_space<vmem>>, vector<16x16xf32>
    %1 = arith.truncf %0 : vector<16x16xf32> to vector<16x16xbf16>
    %c0_1 = arith.constant 0 : index
    %c0_2 = arith.constant 0 : index
    %2 = vector.load %arg2[%c0_1, %c0_2] : memref<16x512xbf16, #tpu.memory_space<vmem>>, vector<16x512xbf16>
    %cst = arith.constant dense<0.000000e+00> : vector<16x512xf32>
    %3 = tpu.matmul %1, %2, %cst {dimension_numbers = #tpu.dot_dimension_numbers<[1], [0], [0], [1], [0, 0, 1, 1], [], []>} : vector<16x16xbf16>, vector<16x512xbf16>, vector<16x512xf32> -> vector<16x512xf32>
    %c0_3 = arith.constant 0 : index
    %c0_4 = arith.constant 0 : index
    %4 = vector.load %arg3[%c0_3, %c0_4] : memref<1x512xf32, #tpu.memory_space<vmem>>, vector<1x512xf32>
    %5 = vector.broadcast %4 : vector<1x512xf32> to vector<16x512xf32>
    %6 = arith.addf %3, %5 : vector<16x512xf32>
    %cst_5 = arith.constant 0.000000e+00 : f32
    %7 = vector.broadcast %cst_5 : f32 to vector<16x512xf32>
    %8 = arith.maximumf %6, %7 : vector<16x512xf32>
    %9 = arith.truncf %8 : vector<16x512xf32> to vector<16x512xbf16>
    %c0_6 = arith.constant 0 : index
    %c0_7 = arith.constant 0 : index
    %10 = vector.load %arg4[%c0_6, %c0_7] : memref<512x256xbf16, #tpu.memory_space<vmem>>, vector<512x256xbf16>
    %cst_8 = arith.constant dense<0.000000e+00> : vector<16x256xf32>
    %11 = tpu.matmul %9, %10, %cst_8 {dimension_numbers = #tpu.dot_dimension_numbers<[1], [0], [0], [1], [0, 0, 1, 1], [], []>} : vector<16x512xbf16>, vector<512x256xbf16>, vector<16x256xf32> -> vector<16x256xf32>
    %c0_9 = arith.constant 0 : index
    %c0_10 = arith.constant 0 : index
    %12 = vector.load %arg5[%c0_9, %c0_10] : memref<1x256xf32, #tpu.memory_space<vmem>>, vector<1x256xf32>
    %13 = vector.broadcast %12 : vector<1x256xf32> to vector<16x256xf32>
    %14 = arith.addf %11, %13 : vector<16x256xf32>
    %cst_11 = arith.constant 0.000000e+00 : f32
    %15 = vector.broadcast %cst_11 : f32 to vector<16x256xf32>
    %16 = arith.maximumf %14, %15 : vector<16x256xf32>
    %c0_12 = arith.constant 0 : index
    %c0_13 = arith.constant 0 : index
    %17 = vector.load %arg6[%c0_12, %c0_13] : memref<256x8xf32, #tpu.memory_space<vmem>>, vector<256x8xf32>
    %cst_14 = arith.constant dense<0.000000e+00> : vector<16x8xf32>
    %18 = tpu.matmul %16, %17, %cst_14 {dimension_numbers = #tpu.dot_dimension_numbers<[1], [0], [0], [1], [0, 0, 1, 1], [], []>} : vector<16x256xf32>, vector<256x8xf32>, vector<16x8xf32> -> vector<16x8xf32>
    %c0_15 = arith.constant 0 : index
    %c0_16 = arith.constant 0 : index
    %19 = vector.load %arg7[%c0_15, %c0_16] : memref<1x8xf32, #tpu.memory_space<vmem>>, vector<1x8xf32>
    %20 = vector.broadcast %19 : vector<1x8xf32> to vector<16x8xf32>
    %21 = arith.addf %18, %20 : vector<16x8xf32>
    %c0_17 = arith.constant 0 : index
    %c0_18 = arith.constant 0 : index
    %22 = vector.load %arg8[%c0_17, %c0_18] : memref<16x8xf32, #tpu.memory_space<vmem>>, vector<16x8xf32>
    tpu.vector_store %arg8[%c0_17, %c0_18], %21 {strides = array<i32>} : memref<16x8xf32, #tpu.memory_space<vmem>>, vector<16x8xf32>,
    return
  }
  func.func @transform_0(%arg0: i32) -> (i32, i32) {
    %c0_i32 = arith.constant 0 : i32
    %c0_i32_0 = arith.constant 0 : i32
    return %arg0, %c0_i32 : i32, i32
  }
  func.func @transform_1(%arg0: i32) -> (i32, i32) {
    %c0_i32 = arith.constant 0 : i32
    %c0_i32_0 = arith.constant 0 : i32
    %c0_i32_1 = arith.constant 0 : i32
    return %c0_i32, %c0_i32_0 : i32, i32
  }
  func.func @transform_2(%arg0: i32) -> (i32, i32) {
    %c0_i32 = arith.constant 0 : i32
    %c0_i32_0 = arith.constant 0 : i32
    %c0_i32_1 = arith.constant 0 : i32
    return %c0_i32, %c0_i32_0 : i32, i32
  }
  func.func @transform_3(%arg0: i32) -> (i32, i32) {
    %c0_i32 = arith.constant 0 : i32
    %c0_i32_0 = arith.constant 0 : i32
    %c0_i32_1 = arith.constant 0 : i32
    return %c0_i32, %c0_i32_0 : i32, i32
  }
  func.func @transform_4(%arg0: i32) -> (i32, i32) {
    %c0_i32 = arith.constant 0 : i32
    %c0_i32_0 = arith.constant 0 : i32
    %c0_i32_1 = arith.constant 0 : i32
    return %c0_i32, %c0_i32_0 : i32, i32
  }
  func.func @transform_5(%arg0: i32) -> (i32, i32) {
    %c0_i32 = arith.constant 0 : i32
    %c0_i32_0 = arith.constant 0 : i32
    %c0_i32_1 = arith.constant 0 : i32
    return %c0_i32, %c0_i32_0 : i32, i32
  }
  func.func @transform_6(%arg0: i32) -> (i32, i32) {
    %c0_i32 = arith.constant 0 : i32
    %c0_i32_0 = arith.constant 0 : i32
    %c0_i32_1 = arith.constant 0 : i32
    return %c0_i32, %c0_i32_0 : i32, i32
  }
  func.func @transform_7(%arg0: i32) -> (i32, i32) {
    %c0_i32 = arith.constant 0 : i32
    %c0_i32_0 = arith.constant 0 : i32
    return %arg0, %c0_i32 : i32, i32
  }
}

</mosaic_0001>

<llo_original>
// kernel: dqn_forward.1
$region0: #{dqn_forward.1}
  #allocation0 [shape = 'u32[]', space=smem, size = 0x4, offset = 0x4, fixed_abs, tag = 'smem constant byte address 0x4 - core index']
  #allocation1 [shape = 'u32[144,128]{1,0:T(1,128)}', space=vmem, size = 0x12000, scoped, tag = 'internal scratch']
  %s0 = inlined_call_operand.vmem [shape: f32[16,16], index: 0, kind: input, shape index: {}]
  %s1 = inlined_call_operand.vmem [shape: bf16[16,512], index: 1, kind: input, shape index: {}]
  %s2 = inlined_call_operand.vmem [shape: f32[1,512], index: 2, kind: input, shape index: {}]
  %s3 = inlined_call_operand.hbm [shape: bf16[512,256], index: 3, kind: input, shape index: {}]
  %s4 = inlined_call_operand.vmem [shape: f32[1,256], index: 4, kind: input, shape index: {}]
  %s5 = inlined_call_operand.vmem [shape: f32[256,8], index: 5, kind: input, shape index: {}]
  %s6 = inlined_call_operand.vmem [shape: f32[1,8], index: 6, kind: input, shape index: {}]
  %s7 = inlined_call_operand.vmem [shape: f32[16,8], index: 7, kind: output, shape index: {}]
  %s8 = sld [smem:[#allocation0]]
  $region42: #{dqn_forward.1} parent=0
    _
  %s10 = ssub.s32 1, %s8
  %s11 = scalar_select 0, %s10, %s8
  $region1: #{dqn_forward.1} parent=0
    #allocation2 [shape = 'u8[262144]{0}', space=vmem, size = 0x40000, scoped, tag = 'input window, operand 3, single buffered']
    #allocation3 [shape = 's32[1]{0}', space=sflag, size = 0x4, scoped, tag = 'scoped memory for dqn_forward.1']
    %12 = vsyncpa [#allocation3], 0
    // Predicated region
    $region2: #{dqn_forward.1} parent=1 // pred_check
      _
    $region3: #{dqn_forward.1} parent=1 // pred_check_branch
      %14 = sbr.rel (0) target = $region5
    $region4: #{dqn_forward.1} parent=1 // pred_region
      _
    $region5: #{dqn_forward.1} parent=1 // pred_fallthru
      _
    // Predicated region
    $region6: #{dqn_forward.1} parent=1 // pred_check
      _
    $region7: #{dqn_forward.1} parent=1 // pred_check_branch
      %16 = sbr.rel (0) target = $region9
    $region8: #{dqn_forward.1} parent=1 // pred_region
      _
    $region9: #{dqn_forward.1} parent=1 // pred_fallthru
      _
    // Predicated region
    $region10: #{dqn_forward.1} parent=1 // pred_check
      _
    $region11: #{dqn_forward.1} parent=1 // pred_check_branch
      %18 = sbr.rel (0) target = $region13
    $region12: #{dqn_forward.1} parent=1 // pred_region
      _
    $region13: #{dqn_forward.1} parent=1 // pred_fallthru
      _
    // Predicated region
    $region14: #{dqn_forward.1} parent=1 // pred_check
      _
    $region15: #{dqn_forward.1} parent=1 // pred_check_branch
      %20 = sbr.rel (0) target = $region17
    $region16: #{dqn_forward.1} parent=1 // pred_region
      %s22 = ssub.s32 8192, 8192
      %23 = vsyncadd [#allocation3], %s22
      %s24 = sshll.u32 [#allocation2], 4
      %s25 = int_to_ptr.vmem [resolvable:$true] %s24
      %30 = dma.hbm_to_vmem [thread:$0]  %s3, 8192, %s25, [#allocation3], 128, 128, 8
    $region17: #{dqn_forward.1} parent=1 // pred_fallthru
      _
    // Predicated region
    $region18: #{dqn_forward.1} parent=1 // pred_check
      _
    $region19: #{dqn_forward.1} parent=1 // pred_check_branch
      %32 = sbr.rel (0) target = $region21
    $region20: #{dqn_forward.1} parent=1 // pred_region
      _
    $region21: #{dqn_forward.1} parent=1 // pred_fallthru
      _
    // Predicated region
    $region22: #{dqn_forward.1} parent=1 // pred_check
      _
    $region23: #{dqn_forward.1} parent=1 // pred_check_branch
      %34 = sbr.rel (0) target = $region25
    $region24: #{dqn_forward.1} parent=1 // pred_region
      _
    $region25: #{dqn_forward.1} parent=1 // pred_fallthru
      _
    // Predicated region
    $region26: #{dqn_forward.1} parent=1 // pred_check
      _
    $region27: #{dqn_forward.1} parent=1 // pred_check_branch
      %36 = sbr.rel (0) target = $region29
    $region28: #{dqn_forward.1} parent=1 // pred_region
      _
    $region29: #{dqn_forward.1} parent=1 // pred_fallthru
      _
    // Predicated region
    $region30: #{dqn_forward.1} parent=1 // pred_check
      _
    $region31: #{dqn_forward.1} parent=1 // pred_check_branch
      %38 = sbr.rel (0) target = $region33
    $region32: #{dqn_forward.1} parent=1 // pred_region
      %39 = dma.done [#allocation3], 8192
    $region33: #{dqn_forward.1} parent=1 // pred_fallthru
      _
    %v41 = vld [vmem:[%s0] sm:$0xff]
    %v42 = vld [vmem:[%s0 + $0x8] sm:$0xff]
    %v43 = vpack.c.bf16 %v42, %v41
    %v44 = vld [vmem:[%s1] sm:$0xff]
    %v45 = vld [vmem:[%s1 + $0x8] sm:$0xff]
    %v46 = vld [vmem:[%s1 + $0x10] sm:$0xff]
    %v47 = vld [vmem:[%s1 + $0x18] sm:$0xff]
    %v48 = vld [vmem:[%s2] sm:$0xf]
    %v50 = vlaneseq
    %v51 = vshrl.u32 %v50, 7
    %v52 = vsub.s32 0, %v51
    %v53 = vrot.slane %v48, %v52
    %v54 = vlaneseq
    %v55 = vshrl.u32 %v54, 7
    %v56 = vsub.s32 1, %v55
    %v57 = vrot.slane %v48, %v56
    %v58 = vlaneseq
    %v59 = vshrl.u32 %v58, 7
    %v60 = vsub.s32 2, %v59
    %v61 = vrot.slane %v48, %v60
    %v62 = vlaneseq
    %v63 = vshrl.u32 %v62, 7
    %v64 = vsub.s32 3, %v63
    %v65 = vrot.slane %v48, %v64
    %v74 = vunpack.c.l.b16 %v44
    %v75 = vunpack.c.h.b16 %v44
    %v76 = vunpack.c.l.b16 %v45
    %v77 = vunpack.c.h.b16 %v45
    %v78 = vunpack.c.l.b16 %v46
    %v79 = vunpack.c.h.b16 %v46
    %v80 = vunpack.c.l.b16 %v47
    %v81 = vunpack.c.h.b16 %v47
    %v82 = vpack.c.b16 %v78, %v74
    %v83 = vpack.c.b16 %v79, %v75
    %v84 = vpack.c.b16 %v80, %v76
    %v85 = vpack.c.b16 %v81, %v77
    %vm90 = vcmask 130048
    %v92 = vsel %vm90, %v43, 0
    %94 = vmatprep.subr.bf16.mxu0 %v83
    %95 = vmatpush1.bf16.msra.mxu0 %v82
    %96 = vmatprep.subr.bf16.mxu0 0
    %97 = vmatpush1.bf16.msra.mxu0 0
    %98 = vmatprep.subr.bf16.mxu0 0
    %99 = vmatpush1.bf16.msra.mxu0 0
    %100 = vmatprep.subr.bf16.mxu0 0
    %101 = vmatpush1.bf16.msra.mxu0 0
    %102 = vmatprep.subr.bf16.mxu0 0
    %103 = vmatpush1.bf16.msra.mxu0 0
    %104 = vmatprep.subr.bf16.mxu0 0
    %105 = vmatpush1.bf16.msra.mxu0 0
    %106 = vmatprep.subr.bf16.mxu0 0
    %107 = vmatpush1.bf16.msra.mxu0 0
    %108 = vmatprep.subr.bf16.mxu0 0
    %109 = vmatpush1.bf16.msra.mxu0 0
    %110 = vmatprep.subr.bf16.mxu0 0
    %111 = vmatpush1.bf16.msra.mxu0 0
    %112 = vmatprep.subr.bf16.mxu0 0
    %113 = vmatpush1.bf16.msra.mxu0 0
    %114 = vmatprep.subr.bf16.mxu0 0
    %115 = vmatpush1.bf16.msra.mxu0 0
    %116 = vmatprep.subr.bf16.mxu0 0
    %117 = vmatpush1.bf16.msra.mxu0 0
    %118 = vmatprep.subr.bf16.mxu0 0
    %119 = vmatpush1.bf16.msra.mxu0 0
    %120 = vmatprep.subr.bf16.mxu0 0
    %121 = vmatpush1.bf16.msra.mxu0 0
    %122 = vmatprep.subr.bf16.mxu0 0
    %123 = vmatpush1.bf16.msra.mxu0 0
    %124 = vmatprep.subr.bf16.mxu0 0
    %125 = vmatpush1.bf16.msra.mxu0 0
    %126 = vmatprep.mubr.bf16.mxu0 0
    %127 = vmatmul.mubr.bf16.gmra.mrb[0].mxu0 %v92
    %v128 = vpop.f32.mrb[0].mxu0
    %v129 = vadd.f32 %v53, %v128
    %v130 = vpop.f32.mrb[0].mxu0
    %v131 = vadd.f32 %v57, %v130
    %v132 = vpop.f32.mrb[0].mxu0
    %v133 = vadd.f32 %v53, %v132
    %v134 = vpop.f32.mrb[0].mxu0
    %v135 = vadd.f32 %v57, %v134
    %136 = vdwg.mxu0
    %137 = vmatprep.subr.bf16.mxu0 %v85
    %138 = vmatpush1.bf16.msra.mxu0 %v84
    %139 = vmatprep.subr.bf16.mxu0 0
    %140 = vmatpush1.bf16.msra.mxu0 0
    %141 = vmatprep.subr.bf16.mxu0 0
    %142 = vmatpush1.bf16.msra.mxu0 0
    %143 = vmatprep.subr.bf16.mxu0 0
    %144 = vmatpush1.bf16.msra.mxu0 0
    %145 = vmatprep.subr.bf16.mxu0 0
    %146 = vmatpush1.bf16.msra.mxu0 0
    %147 = vmatprep.subr.bf16.mxu0 0
    %148 = vmatpush1.bf16.msra.mxu0 0
    %149 = vmatprep.subr.bf16.mxu0 0
    %150 = vmatpush1.bf16.msra.mxu0 0
    %151 = vmatprep.subr.bf16.mxu0 0
    %152 = vmatpush1.bf16.msra.mxu0 0
    %153 = vmatprep.subr.bf16.mxu0 0
    %154 = vmatpush1.bf16.msra.mxu0 0
    %155 = vmatprep.subr.bf16.mxu0 0
    %156 = vmatpush1.bf16.msra.mxu0 0
    %157 = vmatprep.subr.bf16.mxu0 0
    %158 = vmatpush1.bf16.msra.mxu0 0
    %159 = vmatprep.subr.bf16.mxu0 0
    %160 = vmatpush1.bf16.msra.mxu0 0
    %161 = vmatprep.subr.bf16.mxu0 0
    %162 = vmatpush1.bf16.msra.mxu0 0
    %163 = vmatprep.subr.bf16.mxu0 0
    %164 = vmatpush1.bf16.msra.mxu0 0
    %165 = vmatprep.subr.bf16.mxu0 0
    %166 = vmatpush1.bf16.msra.mxu0 0
    %167 = vmatprep.subr.bf16.mxu0 0
    %168 = vmatpush1.bf16.msra.mxu0 0
    %169 = vmatprep.mubr.bf16.mxu0 0
    %170 = vmatmul.mubr.bf16.gmra.mrb[0].mxu0 %v92
    %v171 = vpop.f32.mrb[0].mxu0
    %v172 = vadd.f32 %v61, %v171
    %v173 = vpop.f32.mrb[0].mxu0
    %v174 = vadd.f32 %v65, %v173
    %v175 = vpop.f32.mrb[0].mxu0
    %v176 = vadd.f32 %v61, %v175
    %v177 = vpop.f32.mrb[0].mxu0
    %v178 = vadd.f32 %v65, %v177
    %179 = vdwg.mxu0
    %v180 = vmax.f32 %v129, 0.0
    %v181 = vmax.f32 %v131, 0.0
    %v182 = vmax.f32 %v172, 0.0
    %v183 = vmax.f32 %v174, 0.0
    %v184 = vmax.f32 %v133, 0.0
    %v185 = vmax.f32 %v135, 0.0
    %v186 = vmax.f32 %v176, 0.0
    %v187 = vmax.f32 %v178, 0.0
    %v188 = vpack.c.bf16 %v184, %v180
    %v189 = vpack.c.bf16 %v185, %v181
    %v190 = vpack.c.bf16 %v186, %v182
    %v191 = vpack.c.bf16 %v187, %v183
    %v192 = vld [vmem:[#allocation2] sm:$0xff]
    %v193 = vld [vmem:[#allocation2 + $0x8] sm:$0xff]
    %v194 = vld [vmem:[#allocation2 + $0x10] sm:$0xff]
    %v195 = vld [vmem:[#allocation2 + $0x18] sm:$0xff]
    %v196 = vld [vmem:[#allocation2 + $0x20] sm:$0xff]
    %v197 = vld [vmem:[#allocation2 + $0x28] sm:$0xff]
    %v198 = vld [vmem:[#allocation2 + $0x30] sm:$0xff]
    %v199 = vld [vmem:[#allocation2 + $0x38] sm:$0xff]
    %v200 = vld [vmem:[#allocation2 + $0x40] sm:$0xff]
    %v201 = vld [vmem:[#allocation2 + $0x48] sm:$0xff]
    %v202 = vld [vmem:[#allocation2 + $0x50] sm:$0xff]
    %v203 = vld [vmem:[#allocation2 + $0x58] sm:$0xff]
    %v204 = vld [vmem:[#allocation2 + $0x60] sm:$0xff]
    %v205 = vld [vmem:[#allocation2 + $0x68] sm:$0xff]
    %v206 = vld [vmem:[#allocation2 + $0x70] sm:$0xff]
    %v207 = vld [vmem:[#allocation2 + $0x78] sm:$0xff]
    %v208 = vld [vmem:[#allocation2 + $0x80] sm:$0xff]
    %v209 = vld [vmem:[#allocation2 + $0x88] sm:$0xff]
    %v210 = vld [vmem:[#allocation2 + $0x90] sm:$0xff]
    %v211 = vld [vmem:[#allocation2 + $0x98] sm:$0xff]
    %v212 = vld [vmem:[#allocation2 + $0xa0] sm:$0xff]
    %v213 = vld [vmem:[#allocation2 + $0xa8] sm:$0xff]
    %v214 = vld [vmem:[#allocation2 + $0xb0] sm:$0xff]
    %v215 = vld [vmem:[#allocation2 + $0xb8] sm:$0xff]
    %v216 = vld [vmem:[#allocation2 + $0xc0] sm:$0xff]
    %v217 = vld [vmem:[#allocation2 + $0xc8] sm:$0xff]
    %v218 = vld [vmem:[#allocation2 + $0xd0] sm:$0xff]
    %v219 = vld [vmem:[#allocation2 + $0xd8] sm:$0xff]
    %v220 = vld [vmem:[#allocation2 + $0xe0] sm:$0xff]
    %v221 = vld [vmem:[#allocation2 + $0xe8] sm:$0xff]
    %v222 = vld [vmem:[#allocation2 + $0xf0] sm:$0xff]
    %v223 = vld [vmem:[#allocation2 + $0xf8] sm:$0xff]
    %v224 = vld [vmem:[#allocation2 + $0x100] sm:$0xff]
    %v225 = vld [vmem:[#allocation2 + $0x108] sm:$0xff]
    %v226 = vld [vmem:[#allocation2 + $0x110] sm:$0xff]
    %v227 = vld [vmem:[#allocation2 + $0x118] sm:$0xff]
    %v228 = vld [vmem:[#allocation2 + $0x120] sm:$0xff]
    %v229 = vld [vmem:[#allocation2 + $0x128] sm:$0xff]
    %v230 = vld [vmem:[#allocation2 + $0x130] sm:$0xff]
    %v231 = vld [vmem:[#allocation2 + $0x138] sm:$0xff]
    %v232 = vld [vmem:[#allocation2 + $0x140] sm:$0xff]
    %v233 = vld [vmem:[#allocation2 + $0x148] sm:$0xff]
    %v234 = vld [vmem:[#allocation2 + $0x150] sm:$0xff]
    %v235 = vld [vmem:[#allocation2 + $0x158] sm:$0xff]
    %v236 = vld [vmem:[#allocation2 + $0x160] sm:$0xff]
    %v237 = vld [vmem:[#allocation2 + $0x168] sm:$0xff]
    %v238 = vld [vmem:[#allocation2 + $0x170] sm:$0xff]
    %v239 = vld [vmem:[#allocation2 + $0x178] sm:$0xff]
    %v240 = vld [vmem:[#allocation2 + $0x180] sm:$0xff]
    %v241 = vld [vmem:[#allocation2 + $0x188] sm:$0xff]
    %v242 = vld [vmem:[#allocation2 + $0x190] sm:$0xff]
    %v243 = vld [vmem:[#allocation2 + $0x198] sm:$0xff]
    %v244 = vld [vmem:[#allocation2 + $0x1a0] sm:$0xff]
    %v245 = vld [vmem:[#allocation2 + $0x1a8] sm:$0xff]
    %v246 = vld [vmem:[#allocation2 + $0x1b0] sm:$0xff]
    %v247 = vld [vmem:[#allocation2 + $0x1b8] sm:$0xff]
    %v248 = vld [vmem:[#allocation2 + $0x1c0] sm:$0xff]
    %v249 = vld [vmem:[#allocation2 + $0x1c8] sm:$0xff]
    %v250 = vld [vmem:[#allocation2 + $0x1d0] sm:$0xff]
    %v251 = vld [vmem:[#allocation2 + $0x1d8] sm:$0xff]
    %v252 = vld [vmem:[#allocation2 + $0x1e0] sm:$0xff]
    %v253 = vld [vmem:[#allocation2 + $0x1e8] sm:$0xff]
    %v254 = vld [vmem:[#allocation2 + $0x1f0] sm:$0xff]
    %v255 = vld [vmem:[#allocation2 + $0x1f8] sm:$0xff]
    %v256 = vld [vmem:[%s4] sm:$0x3]
    %v258 = vlaneseq
    %v259 = vshrl.u32 %v258, 7
    %v260 = vsub.s32 0, %v259
    %v261 = vrot.slane %v256, %v260
    %v262 = vlaneseq
    %v263 = vshrl.u32 %v262, 7
    %v264 = vsub.s32 1, %v263
    %v265 = vrot.slane %v256, %v264
    %v332 = vunpack.c.l.b16 %v192
    %v333 = vunpack.c.h.b16 %v192
    %v334 = vunpack.c.l.b16 %v193
    %v335 = vunpack.c.h.b16 %v193
    %v336 = vunpack.c.l.b16 %v194
    %v337 = vunpack.c.h.b16 %v194
    %v338 = vunpack.c.l.b16 %v195
    %v339 = vunpack.c.h.b16 %v195
    %v340 = vunpack.c.l.b16 %v196
    %v341 = vunpack.c.h.b16 %v196
    %v342 = vunpack.c.l.b16 %v197
    %v343 = vunpack.c.h.b16 %v197
    %v344 = vunpack.c.l.b16 %v198
    %v345 = vunpack.c.h.b16 %v198
    %v346 = vunpack.c.l.b16 %v199
    %v347 = vunpack.c.h.b16 %v199
    %v348 = vunpack.c.l.b16 %v200
    %v349 = vunpack.c.h.b16 %v200
    %v350 = vunpack.c.l.b16 %v201
    %v351 = vunpack.c.h.b16 %v201
    %v352 = vunpack.c.l.b16 %v202
    %v353 = vunpack.c.h.b16 %v202
    %v354 = vunpack.c.l.b16 %v203
    %v355 = vunpack.c.h.b16 %v203
    %v356 = vunpack.c.l.b16 %v204
    %v357 = vunpack.c.h.b16 %v204
    %v358 = vunpack.c.l.b16 %v205
    %v359 = vunpack.c.h.b16 %v205
    %v360 = vunpack.c.l.b16 %v206
    %v361 = vunpack.c.h.b16 %v206
    %v362 = vunpack.c.l.b16 %v207
    %v363 = vunpack.c.h.b16 %v207
    %v364 = vunpack.c.l.b16 %v208
    %v365 = vunpack.c.h.b16 %v208
    %v366 = vunpack.c.l.b16 %v209
    %v367 = vunpack.c.h.b16 %v209
    %v368 = vunpack.c.l.b16 %v210
    %v369 = vunpack.c.h.b16 %v210
    %v370 = vunpack.c.l.b16 %v211
    %v371 = vunpack.c.h.b16 %v211
    %v372 = vunpack.c.l.b16 %v212
    %v373 = vunpack.c.h.b16 %v212
    %v374 = vunpack.c.l.b16 %v213
    %v375 = vunpack.c.h.b16 %v213
    %v376 = vunpack.c.l.b16 %v214
    %v377 = vunpack.c.h.b16 %v214
    %v378 = vunpack.c.l.b16 %v215
    %v379 = vunpack.c.h.b16 %v215
    %v380 = vunpack.c.l.b16 %v216
    %v381 = vunpack.c.h.b16 %v216
    %v382 = vunpack.c.l.b16 %v217
    %v383 = vunpack.c.h.b16 %v217
    %v384 = vunpack.c.l.b16 %v218
    %v385 = vunpack.c.h.b16 %v218
    %v386 = vunpack.c.l.b16 %v219
    %v387 = vunpack.c.h.b16 %v219
    %v388 = vunpack.c.l.b16 %v220
    %v389 = vunpack.c.h.b16 %v220
    %v390 = vunpack.c.l.b16 %v221
    %v391 = vunpack.c.h.b16 %v221
    %v392 = vunpack.c.l.b16 %v222
    %v393 = vunpack.c.h.b16 %v222
    %v394 = vunpack.c.l.b16 %v223
    %v395 = vunpack.c.h.b16 %v223
    %v396 = vunpack.c.l.b16 %v224
    %v397 = vunpack.c.h.b16 %v224
    %v398 = vunpack.c.l.b16 %v225
    %v399 = vunpack.c.h.b16 %v225
    %v400 = vunpack.c.l.b16 %v226
    %v401 = vunpack.c.h.b16 %v226
    %v402 = vunpack.c.l.b16 %v227
    %v403 = vunpack.c.h.b16 %v227
    %v404 = vunpack.c.l.b16 %v228
    %v405 = vunpack.c.h.b16 %v228
    %v406 = vunpack.c.l.b16 %v229
    %v407 = vunpack.c.h.b16 %v229
    %v408 = vunpack.c.l.b16 %v230
    %v409 = vunpack.c.h.b16 %v230
    %v410 = vunpack.c.l.b16 %v231
    %v411 = vunpack.c.h.b16 %v231
    %v412 = vunpack.c.l.b16 %v232
    %v413 = vunpack.c.h.b16 %v232
    %v414 = vunpack.c.l.b16 %v233
    %v415 = vunpack.c.h.b16 %v233
    %v416 = vunpack.c.l.b16 %v234
    %v417 = vunpack.c.h.b16 %v234
    %v418 = vunpack.c.l.b16 %v235
    %v419 = vunpack.c.h.b16 %v235
    %v420 = vunpack.c.l.b16 %v236
    %v421 = vunpack.c.h.b16 %v236
    %v422 = vunpack.c.l.b16 %v237
    %v423 = vunpack.c.h.b16 %v237
    %v424 = vunpack.c.l.b16 %v238
    %v425 = vunpack.c.h.b16 %v238
    %v426 = vunpack.c.l.b16 %v239
    %v427 = vunpack.c.h.b16 %v239
    %v428 = vunpack.c.l.b16 %v240
    %v429 = vunpack.c.h.b16 %v240
    %v430 = vunpack.c.l.b16 %v241
    %v431 = vunpack.c.h.b16 %v241
    %v432 = vunpack.c.l.b16 %v242
    %v433 = vunpack.c.h.b16 %v242
    %v434 = vunpack.c.l.b16 %v243
    %v435 = vunpack.c.h.b16 %v243
    %v436 = vunpack.c.l.b16 %v244
    %v437 = vunpack.c.h.b16 %v244
    %v438 = vunpack.c.l.b16 %v245
    %v439 = vunpack.c.h.b16 %v245
    %v440 = vunpack.c.l.b16 %v246
    %v441 = vunpack.c.h.b16 %v246
    %v442 = vunpack.c.l.b16 %v247
    %v443 = vunpack.c.h.b16 %v247
    %v444 = vunpack.c.l.b16 %v248
    %v445 = vunpack.c.h.b16 %v248
    %v446 = vunpack.c.l.b16 %v249
    %v447 = vunpack.c.h.b16 %v249
    %v448 = vunpack.c.l.b16 %v250
    %v449 = vunpack.c.h.b16 %v250
    %v450 = vunpack.c.l.b16 %v251
    %v451 = vunpack.c.h.b16 %v251
    %v452 = vunpack.c.l.b16 %v252
    %v453 = vunpack.c.h.b16 %v252
    %v454 = vunpack.c.l.b16 %v253
    %v455 = vunpack.c.h.b16 %v253
    %v456 = vunpack.c.l.b16 %v254
    %v457 = vunpack.c.h.b16 %v254
    %v458 = vunpack.c.l.b16 %v255
    %v459 = vunpack.c.h.b16 %v255
    %v460 = vpack.c.b16 %v334, %v332
    %v461 = vpack.c.b16 %v335, %v333
    %v462 = vpack.c.b16 %v338, %v336
    %v463 = vpack.c.b16 %v339, %v337
    %v464 = vpack.c.b16 %v342, %v340
    %v465 = vpack.c.b16 %v343, %v341
    %v466 = vpack.c.b16 %v346, %v344
    %v467 = vpack.c.b16 %v347, %v345
    %v468 = vpack.c.b16 %v350, %v348
    %v469 = vpack.c.b16 %v351, %v349
    %v470 = vpack.c.b16 %v354, %v352
    %v471 = vpack.c.b16 %v355, %v353
    %v472 = vpack.c.b16 %v358, %v356
    %v473 = vpack.c.b16 %v359, %v357
    %v474 = vpack.c.b16 %v362, %v360
    %v475 = vpack.c.b16 %v363, %v361
    %v476 = vpack.c.b16 %v366, %v364
    %v477 = vpack.c.b16 %v367, %v365
    %v478 = vpack.c.b16 %v370, %v368
    %v479 = vpack.c.b16 %v371, %v369
    %v480 = vpack.c.b16 %v374, %v372
    %v481 = vpack.c.b16 %v375, %v373
    %v482 = vpack.c.b16 %v378, %v376
    %v483 = vpack.c.b16 %v379, %v377
    %v484 = vpack.c.b16 %v382, %v380
    %v485 = vpack.c.b16 %v383, %v381
    %v486 = vpack.c.b16 %v386, %v384
    %v487 = vpack.c.b16 %v387, %v385
    %v488 = vpack.c.b16 %v390, %v388
    %v489 = vpack.c.b16 %v391, %v389
    %v490 = vpack.c.b16 %v394, %v392
    %v491 = vpack.c.b16 %v395, %v393
    %v492 = vpack.c.b16 %v398, %v396
    %v493 = vpack.c.b16 %v399, %v397
    %v494 = vpack.c.b16 %v402, %v400
    %v495 = vpack.c.b16 %v403, %v401
    %v496 = vpack.c.b16 %v406, %v404
    %v497 = vpack.c.b16 %v407, %v405
    %v498 = vpack.c.b16 %v410, %v408
    %v499 = vpack.c.b16 %v411, %v409
    %v500 = vpack.c.b16 %v414, %v412
    %v501 = vpack.c.b16 %v415, %v413
    %v502 = vpack.c.b16 %v418, %v416
    %v503 = vpack.c.b16 %v419, %v417
    %v504 = vpack.c.b16 %v422, %v420
    %v505 = vpack.c.b16 %v423, %v421
    %v506 = vpack.c.b16 %v426, %v424
    %v507 = vpack.c.b16 %v427, %v425
    %v508 = vpack.c.b16 %v430, %v428
    %v509 = vpack.c.b16 %v431, %v429
    %v510 = vpack.c.b16 %v434, %v432
    %v511 = vpack.c.b16 %v435, %v433
    %v512 = vpack.c.b16 %v438, %v436
    %v513 = vpack.c.b16 %v439, %v437
    %v514 = vpack.c.b16 %v442, %v440
    %v515 = vpack.c.b16 %v443, %v441
    %v516 = vpack.c.b16 %v446, %v444
    %v517 = vpack.c.b16 %v447, %v445
    %v518 = vpack.c.b16 %v450, %v448
    %v519 = vpack.c.b16 %v451, %v449
    %v520 = vpack.c.b16 %v454, %v452
    %v521 = vpack.c.b16 %v455, %v453
    %v522 = vpack.c.b16 %v458, %v456
    %v523 = vpack.c.b16 %v459, %v457
    %588 = vmatprep.subr.bf16.mxu0 %v461
    %589 = vmatpush1.bf16.msra.mxu0 %v460
    %590 = vmatprep.subr.bf16.mxu0 %v463
    %591 = vmatpush1.bf16.msra.mxu0 %v462
    %592 = vmatprep.subr.bf16.mxu0 %v465
    %593 = vmatpush1.bf16.msra.mxu0 %v464
    %594 = vmatprep.subr.bf16.mxu0 %v467
    %595 = vmatpush1.bf16.msra.mxu0 %v466
    %596 = vmatprep.subr.bf16.mxu0 %v469
    %597 = vmatpush1.bf16.msra.mxu0 %v468
    %598 = vmatprep.subr.bf16.mxu0 %v471
    %599 = vmatpush1.bf16.msra.mxu0 %v470
    %600 = vmatprep.subr.bf16.mxu0 %v473
    %601 = vmatpush1.bf16.msra.mxu0 %v472
    %602 = vmatprep.subr.bf16.mxu0 %v475
    %603 = vmatpush1.bf16.msra.mxu0 %v474
    %604 = vmatprep.subr.bf16.mxu0 %v477
    %605 = vmatpush1.bf16.msra.mxu0 %v476
    %606 = vmatprep.subr.bf16.mxu0 %v479
    %607 = vmatpush1.bf16.msra.mxu0 %v478
    %608 = vmatprep.subr.bf16.mxu0 %v481
    %609 = vmatpush1.bf16.msra.mxu0 %v480
    %610 = vmatprep.subr.bf16.mxu0 %v483
    %611 = vmatpush1.bf16.msra.mxu0 %v482
    %612 = vmatprep.subr.bf16.mxu0 %v485
    %613 = vmatpush1.bf16.msra.mxu0 %v484
    %614 = vmatprep.subr.bf16.mxu0 %v487
    %615 = vmatpush1.bf16.msra.mxu0 %v486
    %616 = vmatprep.subr.bf16.mxu0 %v489
    %617 = vmatpush1.bf16.msra.mxu0 %v488
    %618 = vmatprep.subr.bf16.mxu0 %v491
    %619 = vmatpush1.bf16.msra.mxu0 %v490
    %620 = vmatprep.mubr.bf16.mxu0 %v189
    %621 = vmatmul.mubr.bf16.gmra.mrb[0].mxu0 %v188
    %v622 = vpop.f32.mrb[0].mxu0
    %v623 = vadd.f32 %v261, %v622
    %v624 = vpop.f32.mrb[0].mxu0
    %v625 = vadd.f32 %v265, %v624
    %v626 = vpop.f32.mrb[0].mxu0
    %v627 = vadd.f32 %v261, %v626
    %v628 = vpop.f32.mrb[0].mxu0
    %v629 = vadd.f32 %v265, %v628
    %630 = vdwg.mxu0
    %631 = vmatprep.subr.bf16.mxu0 %v493
    %632 = vmatpush1.bf16.msra.mxu0 %v492
    %633 = vmatprep.subr.bf16.mxu0 %v495
    %634 = vmatpush1.bf16.msra.mxu0 %v494
    %635 = vmatprep.subr.bf16.mxu0 %v497
    %636 = vmatpush1.bf16.msra.mxu0 %v496
    %637 = vmatprep.subr.bf16.mxu0 %v499
    %638 = vmatpush1.bf16.msra.mxu0 %v498
    %639 = vmatprep.subr.bf16.mxu0 %v501
    %640 = vmatpush1.bf16.msra.mxu0 %v500
    %641 = vmatprep.subr.bf16.mxu0 %v503
    %642 = vmatpush1.bf16.msra.mxu0 %v502
    %643 = vmatprep.subr.bf16.mxu0 %v505
    %644 = vmatpush1.bf16.msra.mxu0 %v504
    %645 = vmatprep.subr.bf16.mxu0 %v507
    %646 = vmatpush1.bf16.msra.mxu0 %v506
    %647 = vmatprep.subr.bf16.mxu0 %v509
    %648 = vmatpush1.bf16.msra.mxu0 %v508
    %649 = vmatprep.subr.bf16.mxu0 %v511
    %650 = vmatpush1.bf16.msra.mxu0 %v510
    %651 = vmatprep.subr.bf16.mxu0 %v513
    %652 = vmatpush1.bf16.msra.mxu0 %v512
    %653 = vmatprep.subr.bf16.mxu0 %v515
    %654 = vmatpush1.bf16.msra.mxu0 %v514
    %655 = vmatprep.subr.bf16.mxu0 %v517
    %656 = vmatpush1.bf16.msra.mxu0 %v516
    %657 = vmatprep.subr.bf16.mxu0 %v519
    %658 = vmatpush1.bf16.msra.mxu0 %v518
    %659 = vmatprep.subr.bf16.mxu0 %v521
    %660 = vmatpush1.bf16.msra.mxu0 %v520
    %661 = vmatprep.subr.bf16.mxu0 %v523
    %662 = vmatpush1.bf16.msra.mxu0 %v522
    %663 = vmatprep.mubr.bf16.mxu0 %v191
    %664 = vmatmul.mubr.bf16.gmra.mrb[0].mxu0 %v190
    %v665 = vpop.f32.mrb[0].mxu0
    %v666 = vadd.f32 %v623, %v665
    %v667 = vpop.f32.mrb[0].mxu0
    %v668 = vadd.f32 %v625, %v667
    %v669 = vpop.f32.mrb[0].mxu0
    %v670 = vadd.f32 %v627, %v669
    %v671 = vpop.f32.mrb[0].mxu0
    %v672 = vadd.f32 %v629, %v671
    %673 = vdwg.mxu0
    %v674 = vmax.f32 %v666, 0.0
    %v675 = vmax.f32 %v668, 0.0
    %v676 = vmax.f32 %v670, 0.0
    %v677 = vmax.f32 %v672, 0.0
    %v678 = vld [vmem:[%s5] sm:$0xff]
    %v679 = vld [vmem:[%s5 + $0x8] sm:$0xff]
    %v680 = vld [vmem:[%s5 + $0x10] sm:$0xff]
    %v681 = vld [vmem:[%s5 + $0x18] sm:$0xff]
    %v682 = vld [vmem:[%s5 + $0x20] sm:$0xff]
    %v683 = vld [vmem:[%s5 + $0x28] sm:$0xff]
    %v684 = vld [vmem:[%s5 + $0x30] sm:$0xff]
    %v685 = vld [vmem:[%s5 + $0x38] sm:$0xff]
    %v686 = vld [vmem:[%s5 + $0x40] sm:$0xff]
    %v687 = vld [vmem:[%s5 + $0x48] sm:$0xff]
    %v688 = vld [vmem:[%s5 + $0x50] sm:$0xff]
    %v689 = vld [vmem:[%s5 + $0x58] sm:$0xff]
    %v690 = vld [vmem:[%s5 + $0x60] sm:$0xff]
    %v691 = vld [vmem:[%s5 + $0x68] sm:$0xff]
    %v692 = vld [vmem:[%s5 + $0x70] sm:$0xff]
    %v693 = vld [vmem:[%s5 + $0x78] sm:$0xff]
    %v694 = vld [vmem:[%s5 + $0x80] sm:$0xff]
    %v695 = vld [vmem:[%s5 + $0x88] sm:$0xff]
    %v696 = vld [vmem:[%s5 + $0x90] sm:$0xff]
    %v697 = vld [vmem:[%s5 + $0x98] sm:$0xff]
    %v698 = vld [vmem:[%s5 + $0xa0] sm:$0xff]
    %v699 = vld [vmem:[%s5 + $0xa8] sm:$0xff]
    %v700 = vld [vmem:[%s5 + $0xb0] sm:$0xff]
    %v701 = vld [vmem:[%s5 + $0xb8] sm:$0xff]
    %v702 = vld [vmem:[%s5 + $0xc0] sm:$0xff]
    %v703 = vld [vmem:[%s5 + $0xc8] sm:$0xff]
    %v704 = vld [vmem:[%s5 + $0xd0] sm:$0xff]
    %v705 = vld [vmem:[%s5 + $0xd8] sm:$0xff]
    %v706 = vld [vmem:[%s5 + $0xe0] sm:$0xff]
    %v707 = vld [vmem:[%s5 + $0xe8] sm:$0xff]
    %v708 = vld [vmem:[%s5 + $0xf0] sm:$0xff]
    %v709 = vld [vmem:[%s5 + $0xf8] sm:$0xff]
    %v710 = vld [vmem:[%s6] sm:$0x1]
    %v712 = vlaneseq
    %v713 = vshrl.u32 %v712, 7
    %v714 = vsub.s32 0, %v713
    %v715 = vrot.slane %v710, %v714
    %717 = vmatprep.subr.mxu0 0.0
    %718 = vmatpush1.msra.mxu0 %v678
    %719 = vmatprep.subr.mxu0 0.0
    %720 = vmatpush1.msra.mxu0 %v679
    %721 = vmatprep.subr.mxu0 0.0
    %722 = vmatpush1.msra.mxu0 %v680
    %723 = vmatprep.subr.mxu0 0.0
    %724 = vmatpush1.msra.mxu0 %v681
    %725 = vmatprep.subr.mxu0 0.0
    %726 = vmatpush1.msra.mxu0 %v682
    %727 = vmatprep.subr.mxu0 0.0
    %728 = vmatpush1.msra.mxu0 %v683
    %729 = vmatprep.subr.mxu0 0.0
    %730 = vmatpush1.msra.mxu0 %v684
    %731 = vmatprep.subr.mxu0 0.0
    %732 = vmatpush1.msra.mxu0 %v685
    %733 = vmatprep.subr.mxu0 0.0
    %734 = vmatpush1.msra.mxu0 %v686
    %735 = vmatprep.subr.mxu0 0.0
    %736 = vmatpush1.msra.mxu0 %v687
    %737 = vmatprep.subr.mxu0 0.0
    %738 = vmatpush1.msra.mxu0 %v688
    %739 = vmatprep.subr.mxu0 0.0
    %740 = vmatpush1.msra.mxu0 %v689
    %741 = vmatprep.subr.mxu0 0.0
    %742 = vmatpush1.msra.mxu0 %v690
    %743 = vmatprep.subr.mxu0 0.0
    %744 = vmatpush1.msra.mxu0 %v691
    %745 = vmatprep.subr.mxu0 0.0
    %746 = vmatpush1.msra.mxu0 %v692
    %747 = vmatprep.subr.mxu0 0.0
    %748 = vmatpush1.msra.mxu0 %v693
    %749 = vmatprep.subr.mxu0 0.0
    %750 = vmatpush1.msra.mxu0 %v694
    %751 = vmatprep.subr.mxu0 0.0
    %752 = vmatpush1.msra.mxu0 %v695
    %753 = vmatprep.subr.mxu0 0.0
    %754 = vmatpush1.msra.mxu0 %v696
    %755 = vmatprep.subr.mxu0 0.0
    %756 = vmatpush1.msra.mxu0 %v697
    %757 = vmatprep.subr.mxu0 0.0
    %758 = vmatpush1.msra.mxu0 %v698
    %759 = vmatprep.subr.mxu0 0.0
    %760 = vmatpush1.msra.mxu0 %v699
    %761 = vmatprep.subr.mxu0 0.0
    %762 = vmatpush1.msra.mxu0 %v700
    %763 = vmatprep.subr.mxu0 0.0
    %764 = vmatpush1.msra.mxu0 %v701
    %765 = vmatprep.subr.mxu0 0.0
    %766 = vmatpush1.msra.mxu0 %v702
    %767 = vmatprep.subr.mxu0 0.0
    %768 = vmatpush1.msra.mxu0 %v703
    %769 = vmatprep.subr.mxu0 0.0
    %770 = vmatpush1.msra.mxu0 %v704
    %771 = vmatprep.subr.mxu0 0.0
    %772 = vmatpush1.msra.mxu0 %v705
    %773 = vmatprep.subr.mxu0 0.0
    %774 = vmatpush1.msra.mxu0 %v706
    %775 = vmatprep.subr.mxu0 0.0
    %776 = vmatpush1.msra.mxu0 %v707
    %777 = vmatprep.subr.mxu0 0.0
    %778 = vmatpush1.msra.mxu0 %v708
    %779 = vmatprep.subr.mxu0 0.0
    %780 = vmatpush1.msra.mxu0 %v709
    %781 = vmatprep.mubr.f32.mxu0 %v675
    %782 = vmatmul.mubr.f32.gmra.mrb[0].mxu0 %v674
    %v783 = vpop.f32.mrb[0].mxu0
    %v784 = vadd.f32 %v715, %v783
    %v785 = vpop.f32.mrb[0].mxu0
    %786 = vmatprep.mubr.f32.mxu0 %v677
    %787 = vmatmul.mubr.f32.gmra.mrb[0].mxu0 %v676
    %v788 = vpop.f32.mrb[0].mxu0
    %v789 = vadd.f32 %v715, %v788
    %v790 = vpop.f32.mrb[0].mxu0
    %791 = vdwg.mxu0
    %vm792 = vcmask 64512
    %793 = vst.msk [vmem:[%s7] sm:$0xff] %vm792, %v784
    %794 = vst.msk [vmem:[%s7 + $0x8] sm:$0xff] %vm792, %v789
    // Predicated region
    $region34: #{dqn_forward.1} parent=1 // pred_check
      _
    $region35: #{dqn_forward.1} parent=1 // pred_check_branch
      %796 = sbr.rel (0) target = $region37
    $region36: #{dqn_forward.1} parent=1 // pred_region
      _
    $region37: #{dqn_forward.1} parent=1 // pred_fallthru
      _
    // Predicated region
    $region38: #{dqn_forward.1} parent=1 // pred_check
      _
    $region39: #{dqn_forward.1} parent=1 // pred_check_branch
      %798 = sbr.rel (0) target = $region41
    $region40: #{dqn_forward.1} parent=1 // pred_region
      _
    $region41: #{dqn_forward.1} parent=1 // pred_fallthru
      _
    %799 = vsyncpa [#allocation3], 1

</llo_original>
